<compile_context>
chip_gen: v6e
topology: v6e:2x2x1
jax: 0.10.0
libtpu: 0.0.40
codegen_flags: <defaults>
</compile_context>

<pallas_src>
import jax
import jax.numpy as jnp
import numpy as np
from jax.experimental import pallas as pl
from jax.experimental.pallas import tpu as pltpu


_COLS = 1024          # lane-dense last dim (multiple of 128)
_MAX_ROW_BLOCK = 256  # (256, 1024) f32 tile = 1 MiB per buffer


def _soft_exp(alpha, inv_alpha, x):
    """SoftExponential with a runtime scalar alpha (branches via jnp.where)."""
    pos = (jnp.exp(alpha * x) - 1.0) * inv_alpha + alpha
    neg = -jnp.log(1.0 - alpha * (x + alpha)) * inv_alpha
    return jnp.where(alpha == 0.0, x, jnp.where(alpha < 0.0, neg, pos))


def _iam_kernel(alpha_ref, p_ref, q_ref, o_ref):
    a = alpha_ref[0]                              # scalar from SMEM
    inv_a = 1.0 / jnp.where(a == 0.0, 1.0, a)     # safe scalar reciprocal
    p = p_ref[...].astype(jnp.float32)
    q = q_ref[...].astype(jnp.float32)
    s = _soft_exp(-a, -inv_a, p) + _soft_exp(-a, -inv_a, q)
    o_ref[...] = _soft_exp(a, inv_a, s).astype(o_ref.dtype)


def _round_up(x, m):
    return ((x + m - 1) // m) * m


@jax.jit
def interpolate_add_multiply(p, q, alpha):
    """Smooth interpolation between addition and multiplication."""
    assert p.shape == q.shape
    orig_shape = p.shape
    out_dtype = p.dtype
    n = p.size

    rows_needed = pl.cdiv(n, _COLS)
    row_block = min(_MAX_ROW_BLOCK, _round_up(rows_needed, 8))
    rows = _round_up(rows_needed, row_block)
    padded = rows * _COLS

    def to_tiles(x):
        x = x.reshape(-1).astype(jnp.float32)
        x = jnp.pad(x, (0, padded - n))
        return x.reshape(rows, _COLS)

    p2d, q2d = to_tiles(p), to_tiles(q)
    alpha_arr = jnp.asarray(alpha, jnp.float32).reshape((1,))

    blk = pl.BlockSpec((row_block, _COLS), lambda i: (i, 0))
    out2d = pl.pallas_call(
        _iam_kernel,
        out_shape=jax.ShapeDtypeStruct((rows, _COLS), jnp.float32),
        grid=(rows // row_block,),
        in_specs=[
            pl.BlockSpec(memory_space=pltpu.MemorySpace.SMEM),  # alpha scalar
            blk,
            blk,
        ],
        out_specs=blk,
        compiler_params=pltpu.CompilerParams(
            dimension_semantics=("parallel",)),
    )(alpha_arr, p2d, q2d)

    return out2d.reshape(-1)[:n].reshape(orig_shape).astype(out_dtype)


# ----------------------------------------------------------------------------
# Pure-JAX reference mirroring the PyTorch module (branch taken at trace time
# on the current parameter value, exactly as torch's `if alpha == 0.0`).
# ----------------------------------------------------------------------------
def _ref_soft_exp(alpha, x):
    if alpha == 0.0:
        return x
    if alpha < 0.0:
        return -jnp.log(1.0 - alpha * (x + alpha)) / alpha
    return (jnp.exp(alpha * x) - 1.0) / alpha + alpha


def ref_forward(p, q, alpha):
    return _ref_soft_exp(alpha, _ref_soft_exp(-alpha, p) + _ref_soft_exp(-alpha, q))


if __name__ == "__main__":
    key = jax.random.PRNGKey(0)
    kp, kq = jax.random.split(key)
    shape = (2, 4, 16, 16)
    p = 0.5 * jax.random.normal(kp, shape, dtype=jnp.float32)
    q = 0.5 * jax.random.normal(kq, shape, dtype=jnp.float32)

    # Exercise all three alpha regimes with the SAME compiled kernel
    # (alpha is runtime data, not a compile-time constant).
    for alpha in (0.0, 0.5, -0.1):
        out = interpolate_add_multiply(p, q, jnp.float32(alpha))
        out = jax.block_until_ready(out)
        ref = ref_forward(p, q, alpha)
        assert out.shape == shape
        np.testing.assert_allclose(np.asarray(out), np.asarray(ref),
                                   rtol=1e-5, atol=1e-5)

    # alpha == 0 degenerates to plain addition.
    np.testing.assert_allclose(
        np.asarray(interpolate_add_multiply(p, q, jnp.float32(0.0))),
        np.asarray(p + q), rtol=1e-6, atol=1e-6)

    print("KERNEL_OK")
</pallas_src>

<mosaic_0001>
module attributes {stable_mosaic.version = 11 : i64} {
  func.func @_iam_kernel(%arg0: i32, %arg1: memref<1xf32, #tpu.memory_space<smem>>, %arg2: memref<8x1024xf32, #tpu.memory_space<vmem>>, %arg3: memref<8x1024xf32, #tpu.memory_space<vmem>>, %arg4: memref<8x1024xf32, #tpu.memory_space<vmem>>) attributes {dimension_semantics = [#tpu.dimension_semantics<parallel>], iteration_bounds = array<i64: 1>, scalar_prefetch = 0 : i64, scratch_operands = 0 : i64, tpu.core_type = #tpu.core_type<tc>, window_params = [{transform_indices = @transform_0, window_bounds = array<i64: 1>}, {transform_indices = @transform_1, window_bounds = array<i64: 8, 1024>}, {transform_indices = @transform_2, window_bounds = array<i64: 8, 1024>}, {transform_indices = @transform_3, window_bounds = array<i64: 8, 1024>}]} {
    %c0 = arith.constant 0 : index
    %0 = memref.load %arg1[%c0] : memref<1xf32, #tpu.memory_space<smem>>
    %cst = arith.constant 0.000000e+00 : f32
    %1 = arith.cmpf oeq, %0, %cst : f32
    %cst_0 = arith.constant 1.000000e+00 : f32
    %2 = arith.select %1, %cst_0, %0 : f32
    %cst_1 = arith.constant 1.000000e+00 : f32
    %3 = arith.divf %cst_1, %2 : f32
    %c0_2 = arith.constant 0 : index
    %c0_3 = arith.constant 0 : index
    %4 = vector.load %arg2[%c0_2, %c0_3] : memref<8x1024xf32, #tpu.memory_space<vmem>>, vector<8x1024xf32>
    %c0_4 = arith.constant 0 : index
    %c0_5 = arith.constant 0 : index
    %5 = vector.load %arg3[%c0_4, %c0_5] : memref<8x1024xf32, #tpu.memory_space<vmem>>, vector<8x1024xf32>
    %cst_6 = arith.constant 0.000000e+00 : f32
    %6 = arith.subf %cst_6, %0 : f32
    %cst_7 = arith.constant 0.000000e+00 : f32
    %7 = arith.subf %cst_7, %3 : f32
    %8 = vector.broadcast %6 : f32 to vector<8x1024xf32>
    %9 = arith.mulf %8, %4 : vector<8x1024xf32>
    %10 = math.exp %9 : vector<8x1024xf32>
    %cst_8 = arith.constant 1.000000e+00 : f32
    %11 = vector.broadcast %cst_8 : f32 to vector<8x1024xf32>
    %12 = arith.subf %10, %11 : vector<8x1024xf32>
    %13 = vector.broadcast %7 : f32 to vector<8x1024xf32>
    %14 = arith.mulf %12, %13 : vector<8x1024xf32>
    %15 = vector.broadcast %6 : f32 to vector<8x1024xf32>
    %16 = arith.addf %14, %15 : vector<8x1024xf32>
    %17 = vector.broadcast %6 : f32 to vector<8x1024xf32>
    %18 = arith.addf %4, %17 : vector<8x1024xf32>
    %19 = vector.broadcast %6 : f32 to vector<8x1024xf32>
    %20 = arith.mulf %19, %18 : vector<8x1024xf32>
    %cst_9 = arith.constant 1.000000e+00 : f32
    %21 = vector.broadcast %cst_9 : f32 to vector<8x1024xf32>
    %22 = arith.subf %21, %20 : vector<8x1024xf32>
    %23 = math.log %22 : vector<8x1024xf32>
    %cst_10 = arith.constant 0.000000e+00 : f32
    %24 = vector.broadcast %cst_10 : f32 to vector<8x1024xf32>
    %25 = arith.subf %24, %23 : vector<8x1024xf32>
    %26 = vector.broadcast %7 : f32 to vector<8x1024xf32>
    %27 = arith.mulf %25, %26 : vector<8x1024xf32>
    %cst_11 = arith.constant 0.000000e+00 : f32
    %28 = arith.cmpf oeq, %6, %cst_11 : f32
    %cst_12 = arith.constant 0.000000e+00 : f32
    %29 = arith.cmpf olt, %6, %cst_12 : f32
    %30 = arith.select %29, %27, %16 : vector<8x1024xf32>
    %31 = arith.select %28, %4, %30 : vector<8x1024xf32>
    %cst_13 = arith.constant 0.000000e+00 : f32
    %32 = arith.subf %cst_13, %0 : f32
    %cst_14 = arith.constant 0.000000e+00 : f32
    %33 = arith.subf %cst_14, %3 : f32
    %34 = vector.broadcast %32 : f32 to vector<8x1024xf32>
    %35 = arith.mulf %34, %5 : vector<8x1024xf32>
    %36 = math.exp %35 : vector<8x1024xf32>
    %cst_15 = arith.constant 1.000000e+00 : f32
    %37 = vector.broadcast %cst_15 : f32 to vector<8x1024xf32>
    %38 = arith.subf %36, %37 : vector<8x1024xf32>
    %39 = vector.broadcast %33 : f32 to vector<8x1024xf32>
    %40 = arith.mulf %38, %39 : vector<8x1024xf32>
    %41 = vector.broadcast %32 : f32 to vector<8x1024xf32>
    %42 = arith.addf %40, %41 : vector<8x1024xf32>
    %43 = vector.broadcast %32 : f32 to vector<8x1024xf32>
    %44 = arith.addf %5, %43 : vector<8x1024xf32>
    %45 = vector.broadcast %32 : f32 to vector<8x1024xf32>
    %46 = arith.mulf %45, %44 : vector<8x1024xf32>
    %cst_16 = arith.constant 1.000000e+00 : f32
    %47 = vector.broadcast %cst_16 : f32 to vector<8x1024xf32>
    %48 = arith.subf %47, %46 : vector<8x1024xf32>
    %49 = math.log %48 : vector<8x1024xf32>
    %cst_17 = arith.constant 0.000000e+00 : f32
    %50 = vector.broadcast %cst_17 : f32 to vector<8x1024xf32>
    %51 = arith.subf %50, %49 : vector<8x1024xf32>
    %52 = vector.broadcast %33 : f32 to vector<8x1024xf32>
    %53 = arith.mulf %51, %52 : vector<8x1024xf32>
    %cst_18 = arith.constant 0.000000e+00 : f32
    %54 = arith.cmpf oeq, %32, %cst_18 : f32
    %cst_19 = arith.constant 0.000000e+00 : f32
    %55 = arith.cmpf olt, %32, %cst_19 : f32
    %56 = arith.select %55, %53, %42 : vector<8x1024xf32>
    %57 = arith.select %54, %5, %56 : vector<8x1024xf32>
    %58 = arith.addf %31, %57 : vector<8x1024xf32>
    %59 = vector.broadcast %0 : f32 to vector<8x1024xf32>
    %60 = arith.mulf %59, %58 : vector<8x1024xf32>
    %61 = math.exp %60 : vector<8x1024xf32>
    %cst_20 = arith.constant 1.000000e+00 : f32
    %62 = vector.broadcast %cst_20 : f32 to vector<8x1024xf32>
    %63 = arith.subf %61, %62 : vector<8x1024xf32>
    %64 = vector.broadcast %3 : f32 to vector<8x1024xf32>
    %65 = arith.mulf %63, %64 : vector<8x1024xf32>
    %66 = vector.broadcast %0 : f32 to vector<8x1024xf32>
    %67 = arith.addf %65, %66 : vector<8x1024xf32>
    %68 = vector.broadcast %0 : f32 to vector<8x1024xf32>
    %69 = arith.addf %58, %68 : vector<8x1024xf32>
    %70 = vector.broadcast %0 : f32 to vector<8x1024xf32>
    %71 = arith.mulf %70, %69 : vector<8x1024xf32>
    %cst_21 = arith.constant 1.000000e+00 : f32
    %72 = vector.broadcast %cst_21 : f32 to vector<8x1024xf32>
    %73 = arith.subf %72, %71 : vector<8x1024xf32>
    %74 = math.log %73 : vector<8x1024xf32>
    %cst_22 = arith.constant 0.000000e+00 : f32
    %75 = vector.broadcast %cst_22 : f32 to vector<8x1024xf32>
    %76 = arith.subf %75, %74 : vector<8x1024xf32>
    %77 = vector.broadcast %3 : f32 to vector<8x1024xf32>
    %78 = arith.mulf %76, %77 : vector<8x1024xf32>
    %cst_23 = arith.constant 0.000000e+00 : f32
    %79 = arith.cmpf oeq, %0, %cst_23 : f32
    %cst_24 = arith.constant 0.000000e+00 : f32
    %80 = arith.cmpf olt, %0, %cst_24 : f32
    %81 = arith.select %80, %78, %67 : vector<8x1024xf32>
    %82 = arith.select %79, %58, %81 : vector<8x1024xf32>
    %c0_25 = arith.constant 0 : index
    %c0_26 = arith.constant 0 : index
    %83 = vector.load %arg4[%c0_25, %c0_26] : memref<8x1024xf32, #tpu.memory_space<vmem>>, vector<8x1024xf32>
    tpu.vector_store %arg4[%c0_25, %c0_26], %82 {strides = array<i32>} : memref<8x1024xf32, #tpu.memory_space<vmem>>, vector<8x1024xf32>,
    return
  }
  func.func @transform_0(%arg0: i32) -> i32 {
    %c0_i32 = arith.constant 0 : i32
    %c0_i32_0 = arith.constant 0 : i32
    return %c0_i32 : i32
  }
  func.func @transform_1(%arg0: i32) -> (i32, i32) {
    %c0_i32 = arith.constant 0 : i32
    %c0_i32_0 = arith.constant 0 : i32
    return %arg0, %c0_i32 : i32, i32
  }
  func.func @transform_2(%arg0: i32) -> (i32, i32) {
    %c0_i32 = arith.constant 0 : i32
    %c0_i32_0 = arith.constant 0 : i32
    return %arg0, %c0_i32 : i32, i32
  }
  func.func @transform_3(%arg0: i32) -> (i32, i32) {
    %c0_i32 = arith.constant 0 : i32
    %c0_i32_0 = arith.constant 0 : i32
    return %arg0, %c0_i32 : i32, i32
  }
}

</mosaic_0001>

<llo_original>
// kernel: interpolate_add_multiply.1
$region0: #{interpolate_add_multiply.1}
  #allocation0 [shape = 'u32[]', space=smem, size = 0x4, offset = 0x4, fixed_abs, tag = 'smem constant byte address 0x4 - core index']
  #allocation1 [shape = 'u32[144,128]{1,0:T(1,128)}', space=vmem, size = 0x12000, scoped, tag = 'internal scratch']
  #allocation2 [shape = 'f32[1]{0:T(128)S(6)}', space=smem, size = 0x200, scoped, tag = 'scoped memory for interpolate_add_multiply.1']
  %s0 = inlined_call_operand.<no memory space> [shape: f32[1], index: 0, kind: input, shape index: {}]
  %s1 = inlined_call_operand.vmem [shape: f32[8,1024], index: 1, kind: input, shape index: {}]
  %s2 = inlined_call_operand.vmem [shape: f32[8,1024], index: 2, kind: input, shape index: {}]
  %s3 = inlined_call_operand.vmem [shape: f32[8,1024], index: 3, kind: output, shape index: {}]
  %s4 = sld [smem:[#allocation0]]
  $region22: #{interpolate_add_multiply.1} parent=0
    _
  %s6 = ssub.s32 1, %s4
  %s7 = scalar_select 0, %s6, %s4
  %8 = sst [smem:[#allocation2]] %s0
  // Predicated region
  $region2: #{interpolate_add_multiply.1} parent=0 // pred_check
    _
  $region3: #{interpolate_add_multiply.1} parent=0 // pred_check_branch
    %10 = sbr.rel (0) target = $region5
  $region4: #{interpolate_add_multiply.1} parent=0 // pred_region
    _
  $region5: #{interpolate_add_multiply.1} parent=0 // pred_fallthru
    _
  // Predicated region
  $region6: #{interpolate_add_multiply.1} parent=0 // pred_check
    _
  $region7: #{interpolate_add_multiply.1} parent=0 // pred_check_branch
    %12 = sbr.rel (0) target = $region9
  $region8: #{interpolate_add_multiply.1} parent=0 // pred_region
    _
  $region9: #{interpolate_add_multiply.1} parent=0 // pred_fallthru
    _
  // Predicated region
  $region10: #{interpolate_add_multiply.1} parent=0 // pred_check
    _
  $region11: #{interpolate_add_multiply.1} parent=0 // pred_check_branch
    %14 = sbr.rel (0) target = $region13
  $region12: #{interpolate_add_multiply.1} parent=0 // pred_region
    _
  $region13: #{interpolate_add_multiply.1} parent=0 // pred_fallthru
    _
  %s15 = sld [smem:[#allocation2]]
  %p16 = scmp.eq.f32.partialorder %s15, 0.0
  %s17 = scalar_select %p16, 1.0, %s15
  %v18 = vstv %s17
  %v19 = vrcp.pop %v18
  %s20 = vtos %v19
  %v21 = vld [vmem:[%s1] sm:$0xff]
  %v22 = vld [vmem:[%s1 + $0x8] sm:$0xff]
  %v23 = vld [vmem:[%s1 + $0x10] sm:$0xff]
  %v24 = vld [vmem:[%s1 + $0x18] sm:$0xff]
  %v25 = vld [vmem:[%s1 + $0x20] sm:$0xff]
  %v26 = vld [vmem:[%s1 + $0x28] sm:$0xff]
  %v27 = vld [vmem:[%s1 + $0x30] sm:$0xff]
  %v28 = vld [vmem:[%s1 + $0x38] sm:$0xff]
  %v29 = vld [vmem:[%s2] sm:$0xff]
  %v30 = vld [vmem:[%s2 + $0x8] sm:$0xff]
  %v31 = vld [vmem:[%s2 + $0x10] sm:$0xff]
  %v32 = vld [vmem:[%s2 + $0x18] sm:$0xff]
  %v33 = vld [vmem:[%s2 + $0x20] sm:$0xff]
  %v34 = vld [vmem:[%s2 + $0x28] sm:$0xff]
  %v35 = vld [vmem:[%s2 + $0x30] sm:$0xff]
  %v36 = vld [vmem:[%s2 + $0x38] sm:$0xff]
  %s37 = ssub.f32 0.0, %s15
  %s38 = ssub.f32 0.0, %s20
  %v39 = vstv %s37
  %v40 = vmul.f32 %v39, %v21
  %v41 = vmul.f32 %v39, %v22
  %v42 = vmul.f32 %v39, %v23
  %v43 = vmul.f32 %v39, %v24
  %v44 = vmul.f32 %v39, %v25
  %v45 = vmul.f32 %v39, %v26
  %v46 = vmul.f32 %v39, %v27
  %v47 = vmul.f32 %v39, %v28
  %v48 = vmul.f32 %v40, 1.442695
  %v49 = vpow.pop %v48
  %v50 = vmul.f32 %v41, 1.442695
  %v51 = vpow.pop %v50
  %v52 = vmul.f32 %v42, 1.442695
  %v53 = vpow.pop %v52
  %v54 = vmul.f32 %v43, 1.442695
  %v55 = vpow.pop %v54
  %v56 = vmul.f32 %v44, 1.442695
  %v57 = vpow.pop %v56
  %v58 = vmul.f32 %v45, 1.442695
  %v59 = vpow.pop %v58
  %v60 = vmul.f32 %v46, 1.442695
  %v61 = vpow.pop %v60
  %v62 = vmul.f32 %v47, 1.442695
  %v63 = vpow.pop %v62
  %v64 = vsub.f32 %v49, 1.0
  %v65 = vsub.f32 %v51, 1.0
  %v66 = vsub.f32 %v53, 1.0
  %v67 = vsub.f32 %v55, 1.0
  %v68 = vsub.f32 %v57, 1.0
  %v69 = vsub.f32 %v59, 1.0
  %v70 = vsub.f32 %v61, 1.0
  %v71 = vsub.f32 %v63, 1.0
  %v72 = vstv %s38
  %v73 = vmul.f32 %v64, %v72
  %v74 = vmul.f32 %v65, %v72
  %v75 = vmul.f32 %v66, %v72
  %v76 = vmul.f32 %v67, %v72
  %v77 = vmul.f32 %v68, %v72
  %v78 = vmul.f32 %v69, %v72
  %v79 = vmul.f32 %v70, %v72
  %v80 = vmul.f32 %v71, %v72
  %v81 = vadd.f32 %v73, %v39
  %v82 = vadd.f32 %v74, %v39
  %v83 = vadd.f32 %v75, %v39
  %v84 = vadd.f32 %v76, %v39
  %v85 = vadd.f32 %v77, %v39
  %v86 = vadd.f32 %v78, %v39
  %v87 = vadd.f32 %v79, %v39
  %v88 = vadd.f32 %v80, %v39
  %v89 = vadd.f32 %v21, %v39
  %v90 = vadd.f32 %v22, %v39
  %v91 = vadd.f32 %v23, %v39
  %v92 = vadd.f32 %v24, %v39
  %v93 = vadd.f32 %v25, %v39
  %v94 = vadd.f32 %v26, %v39
  %v95 = vadd.f32 %v27, %v39
  %v96 = vadd.f32 %v28, %v39
  %v97 = vmul.f32 %v39, %v89
  %v98 = vmul.f32 %v39, %v90
  %v99 = vmul.f32 %v39, %v91
  %v100 = vmul.f32 %v39, %v92
  %v101 = vmul.f32 %v39, %v93
  %v102 = vmul.f32 %v39, %v94
  %v103 = vmul.f32 %v39, %v95
  %v104 = vmul.f32 %v39, %v96
  %v105 = vsub.f32 1.0, %v97
  %v106 = vsub.f32 1.0, %v98
  %v107 = vsub.f32 1.0, %v99
  %v108 = vsub.f32 1.0, %v100
  %v109 = vsub.f32 1.0, %v101
  %v110 = vsub.f32 1.0, %v102
  %v111 = vsub.f32 1.0, %v103
  %v112 = vsub.f32 1.0, %v104
  %v113 = vlog2.pop %v105
  %v114 = vmul.f32 %v113, 0.6931472
  %v115 = vlog2.pop %v106
  %v116 = vmul.f32 %v115, 0.6931472
  %v117 = vlog2.pop %v107
  %v118 = vmul.f32 %v117, 0.6931472
  %v119 = vlog2.pop %v108
  %v120 = vmul.f32 %v119, 0.6931472
  %v121 = vlog2.pop %v109
  %v122 = vmul.f32 %v121, 0.6931472
  %v123 = vlog2.pop %v110
  %v124 = vmul.f32 %v123, 0.6931472
  %v125 = vlog2.pop %v111
  %v126 = vmul.f32 %v125, 0.6931472
  %v127 = vlog2.pop %v112
  %v128 = vmul.f32 %v127, 0.6931472
  %v129 = vsub.f32 0.0, %v114
  %v130 = vsub.f32 0.0, %v116
  %v131 = vsub.f32 0.0, %v118
  %v132 = vsub.f32 0.0, %v120
  %v133 = vsub.f32 0.0, %v122
  %v134 = vsub.f32 0.0, %v124
  %v135 = vsub.f32 0.0, %v126
  %v136 = vsub.f32 0.0, %v128
  %v137 = vmul.f32 %v129, %v72
  %v138 = vmul.f32 %v130, %v72
  %v139 = vmul.f32 %v131, %v72
  %v140 = vmul.f32 %v132, %v72
  %v141 = vmul.f32 %v133, %v72
  %v142 = vmul.f32 %v134, %v72
  %v143 = vmul.f32 %v135, %v72
  %v144 = vmul.f32 %v136, %v72
  %p145 = scmp.eq.f32.partialorder %s37, 0.0
  %p146 = scmp.lt.f32.partialorder %s37, 0.0
  %s147 = scalar_select %p146, 1, 0
  %v148 = vstv %s147
  %vm149 = vcmp.eq.s32.totalorder %v148, 1
  %v150 = vsel %vm149, %v137, %v81
  %v151 = vsel %vm149, %v138, %v82
  %v152 = vsel %vm149, %v139, %v83
  %v153 = vsel %vm149, %v140, %v84
  %v154 = vsel %vm149, %v141, %v85
  %v155 = vsel %vm149, %v142, %v86
  %v156 = vsel %vm149, %v143, %v87
  %v157 = vsel %vm149, %v144, %v88
  %s158 = scalar_select %p145, 1, 0
  %v159 = vstv %s158
  %vm160 = vcmp.eq.s32.totalorder %v159, 1
  %v161 = vsel %vm160, %v21, %v150
  %v162 = vsel %vm160, %v22, %v151
  %v163 = vsel %vm160, %v23, %v152
  %v164 = vsel %vm160, %v24, %v153
  %v165 = vsel %vm160, %v25, %v154
  %v166 = vsel %vm160, %v26, %v155
  %v167 = vsel %vm160, %v27, %v156
  %v168 = vsel %vm160, %v28, %v157
  %v169 = vmul.f32 %v39, %v29
  %v170 = vmul.f32 %v39, %v30
  %v171 = vmul.f32 %v39, %v31
  %v172 = vmul.f32 %v39, %v32
  %v173 = vmul.f32 %v39, %v33
  %v174 = vmul.f32 %v39, %v34
  %v175 = vmul.f32 %v39, %v35
  %v176 = vmul.f32 %v39, %v36
  %v177 = vmul.f32 %v169, 1.442695
  %v178 = vpow.pop %v177
  %v179 = vmul.f32 %v170, 1.442695
  %v180 = vpow.pop %v179
  %v181 = vmul.f32 %v171, 1.442695
  %v182 = vpow.pop %v181
  %v183 = vmul.f32 %v172, 1.442695
  %v184 = vpow.pop %v183
  %v185 = vmul.f32 %v173, 1.442695
  %v186 = vpow.pop %v185
  %v187 = vmul.f32 %v174, 1.442695
  %v188 = vpow.pop %v187
  %v189 = vmul.f32 %v175, 1.442695
  %v190 = vpow.pop %v189
  %v191 = vmul.f32 %v176, 1.442695
  %v192 = vpow.pop %v191
  %v193 = vsub.f32 %v178, 1.0
  %v194 = vsub.f32 %v180, 1.0
  %v195 = vsub.f32 %v182, 1.0
  %v196 = vsub.f32 %v184, 1.0
  %v197 = vsub.f32 %v186, 1.0
  %v198 = vsub.f32 %v188, 1.0
  %v199 = vsub.f32 %v190, 1.0
  %v200 = vsub.f32 %v192, 1.0
  %v201 = vmul.f32 %v193, %v72
  %v202 = vmul.f32 %v194, %v72
  %v203 = vmul.f32 %v195, %v72
  %v204 = vmul.f32 %v196, %v72
  %v205 = vmul.f32 %v197, %v72
  %v206 = vmul.f32 %v198, %v72
  %v207 = vmul.f32 %v199, %v72
  %v208 = vmul.f32 %v200, %v72
  %v209 = vadd.f32 %v201, %v39
  %v210 = vadd.f32 %v202, %v39
  %v211 = vadd.f32 %v203, %v39
  %v212 = vadd.f32 %v204, %v39
  %v213 = vadd.f32 %v205, %v39
  %v214 = vadd.f32 %v206, %v39
  %v215 = vadd.f32 %v207, %v39
  %v216 = vadd.f32 %v208, %v39
  %v217 = vadd.f32 %v29, %v39
  %v218 = vadd.f32 %v30, %v39
  %v219 = vadd.f32 %v31, %v39
  %v220 = vadd.f32 %v32, %v39
  %v221 = vadd.f32 %v33, %v39
  %v222 = vadd.f32 %v34, %v39
  %v223 = vadd.f32 %v35, %v39
  %v224 = vadd.f32 %v36, %v39
  %v225 = vmul.f32 %v39, %v217
  %v226 = vmul.f32 %v39, %v218
  %v227 = vmul.f32 %v39, %v219
  %v228 = vmul.f32 %v39, %v220
  %v229 = vmul.f32 %v39, %v221
  %v230 = vmul.f32 %v39, %v222
  %v231 = vmul.f32 %v39, %v223
  %v232 = vmul.f32 %v39, %v224
  %v233 = vsub.f32 1.0, %v225
  %v234 = vsub.f32 1.0, %v226
  %v235 = vsub.f32 1.0, %v227
  %v236 = vsub.f32 1.0, %v228
  %v237 = vsub.f32 1.0, %v229
  %v238 = vsub.f32 1.0, %v230
  %v239 = vsub.f32 1.0, %v231
  %v240 = vsub.f32 1.0, %v232
  %v241 = vlog2.pop %v233
  %v242 = vmul.f32 %v241, 0.6931472
  %v243 = vlog2.pop %v234
  %v244 = vmul.f32 %v243, 0.6931472
  %v245 = vlog2.pop %v235
  %v246 = vmul.f32 %v245, 0.6931472
  %v247 = vlog2.pop %v236
  %v248 = vmul.f32 %v247, 0.6931472
  %v249 = vlog2.pop %v237
  %v250 = vmul.f32 %v249, 0.6931472
  %v251 = vlog2.pop %v238
  %v252 = vmul.f32 %v251, 0.6931472
  %v253 = vlog2.pop %v239
  %v254 = vmul.f32 %v253, 0.6931472
  %v255 = vlog2.pop %v240
  %v256 = vmul.f32 %v255, 0.6931472
  %v257 = vsub.f32 0.0, %v242
  %v258 = vsub.f32 0.0, %v244
  %v259 = vsub.f32 0.0, %v246
  %v260 = vsub.f32 0.0, %v248
  %v261 = vsub.f32 0.0, %v250
  %v262 = vsub.f32 0.0, %v252
  %v263 = vsub.f32 0.0, %v254
  %v264 = vsub.f32 0.0, %v256
  %v265 = vmul.f32 %v257, %v72
  %v266 = vmul.f32 %v258, %v72
  %v267 = vmul.f32 %v259, %v72
  %v268 = vmul.f32 %v260, %v72
  %v269 = vmul.f32 %v261, %v72
  %v270 = vmul.f32 %v262, %v72
  %v271 = vmul.f32 %v263, %v72
  %v272 = vmul.f32 %v264, %v72
  %v273 = vsel %vm149, %v265, %v209
  %v274 = vsel %vm149, %v266, %v210
  %v275 = vsel %vm149, %v267, %v211
  %v276 = vsel %vm149, %v268, %v212
  %v277 = vsel %vm149, %v269, %v213
  %v278 = vsel %vm149, %v270, %v214
  %v279 = vsel %vm149, %v271, %v215
  %v280 = vsel %vm149, %v272, %v216
  %v281 = vsel %vm160, %v29, %v273
  %v282 = vsel %vm160, %v30, %v274
  %v283 = vsel %vm160, %v31, %v275
  %v284 = vsel %vm160, %v32, %v276
  %v285 = vsel %vm160, %v33, %v277
  %v286 = vsel %vm160, %v34, %v278
  %v287 = vsel %vm160, %v35, %v279
  %v288 = vsel %vm160, %v36, %v280
  %v289 = vadd.f32 %v161, %v281
  %v290 = vadd.f32 %v162, %v282
  %v291 = vadd.f32 %v163, %v283
  %v292 = vadd.f32 %v164, %v284
  %v293 = vadd.f32 %v165, %v285
  %v294 = vadd.f32 %v166, %v286
  %v295 = vadd.f32 %v167, %v287
  %v296 = vadd.f32 %v168, %v288
  %v297 = vstv %s15
  %v298 = vmul.f32 %v297, %v289
  %v299 = vmul.f32 %v297, %v290
  %v300 = vmul.f32 %v297, %v291
  %v301 = vmul.f32 %v297, %v292
  %v302 = vmul.f32 %v297, %v293
  %v303 = vmul.f32 %v297, %v294
  %v304 = vmul.f32 %v297, %v295
  %v305 = vmul.f32 %v297, %v296
  %v306 = vmul.f32 %v298, 1.442695
  %v307 = vpow.pop %v306
  %v308 = vmul.f32 %v299, 1.442695
  %v309 = vpow.pop %v308
  %v310 = vmul.f32 %v300, 1.442695
  %v311 = vpow.pop %v310
  %v312 = vmul.f32 %v301, 1.442695
  %v313 = vpow.pop %v312
  %v314 = vmul.f32 %v302, 1.442695
  %v315 = vpow.pop %v314
  %v316 = vmul.f32 %v303, 1.442695
  %v317 = vpow.pop %v316
  %v318 = vmul.f32 %v304, 1.442695
  %v319 = vpow.pop %v318
  %v320 = vmul.f32 %v305, 1.442695
  %v321 = vpow.pop %v320
  %v322 = vsub.f32 %v307, 1.0
  %v323 = vsub.f32 %v309, 1.0
  %v324 = vsub.f32 %v311, 1.0
  %v325 = vsub.f32 %v313, 1.0
  %v326 = vsub.f32 %v315, 1.0
  %v327 = vsub.f32 %v317, 1.0
  %v328 = vsub.f32 %v319, 1.0
  %v329 = vsub.f32 %v321, 1.0
  %v330 = vstv %s20
  %v331 = vmul.f32 %v322, %v330
  %v332 = vmul.f32 %v323, %v330
  %v333 = vmul.f32 %v324, %v330
  %v334 = vmul.f32 %v325, %v330
  %v335 = vmul.f32 %v326, %v330
  %v336 = vmul.f32 %v327, %v330
  %v337 = vmul.f32 %v328, %v330
  %v338 = vmul.f32 %v329, %v330
  %v339 = vadd.f32 %v331, %v297
  %v340 = vadd.f32 %v332, %v297
  %v341 = vadd.f32 %v333, %v297
  %v342 = vadd.f32 %v334, %v297
  %v343 = vadd.f32 %v335, %v297
  %v344 = vadd.f32 %v336, %v297
  %v345 = vadd.f32 %v337, %v297
  %v346 = vadd.f32 %v338, %v297
  %v347 = vadd.f32 %v289, %v297
  %v348 = vadd.f32 %v290, %v297
  %v349 = vadd.f32 %v291, %v297
  %v350 = vadd.f32 %v292, %v297
  %v351 = vadd.f32 %v293, %v297
  %v352 = vadd.f32 %v294, %v297
  %v353 = vadd.f32 %v295, %v297
  %v354 = vadd.f32 %v296, %v297
  %v355 = vmul.f32 %v297, %v347
  %v356 = vmul.f32 %v297, %v348
  %v357 = vmul.f32 %v297, %v349
  %v358 = vmul.f32 %v297, %v350
  %v359 = vmul.f32 %v297, %v351
  %v360 = vmul.f32 %v297, %v352
  %v361 = vmul.f32 %v297, %v353
  %v362 = vmul.f32 %v297, %v354
  %v363 = vsub.f32 1.0, %v355
  %v364 = vsub.f32 1.0, %v356
  %v365 = vsub.f32 1.0, %v357
  %v366 = vsub.f32 1.0, %v358
  %v367 = vsub.f32 1.0, %v359
  %v368 = vsub.f32 1.0, %v360
  %v369 = vsub.f32 1.0, %v361
  %v370 = vsub.f32 1.0, %v362
  %v371 = vlog2.pop %v363
  %v372 = vmul.f32 %v371, 0.6931472
  %v373 = vlog2.pop %v364
  %v374 = vmul.f32 %v373, 0.6931472
  %v375 = vlog2.pop %v365
  %v376 = vmul.f32 %v375, 0.6931472
  %v377 = vlog2.pop %v366
  %v378 = vmul.f32 %v377, 0.6931472
  %v379 = vlog2.pop %v367
  %v380 = vmul.f32 %v379, 0.6931472
  %v381 = vlog2.pop %v368
  %v382 = vmul.f32 %v381, 0.6931472
  %v383 = vlog2.pop %v369
  %v384 = vmul.f32 %v383, 0.6931472
  %v385 = vlog2.pop %v370
  %v386 = vmul.f32 %v385, 0.6931472
  %v387 = vsub.f32 0.0, %v372
  %v388 = vsub.f32 0.0, %v374
  %v389 = vsub.f32 0.0, %v376
  %v390 = vsub.f32 0.0, %v378
  %v391 = vsub.f32 0.0, %v380
  %v392 = vsub.f32 0.0, %v382
  %v393 = vsub.f32 0.0, %v384
  %v394 = vsub.f32 0.0, %v386
  %v395 = vmul.f32 %v387, %v330
  %v396 = vmul.f32 %v388, %v330
  %v397 = vmul.f32 %v389, %v330
  %v398 = vmul.f32 %v390, %v330
  %v399 = vmul.f32 %v391, %v330
  %v400 = vmul.f32 %v392, %v330
  %v401 = vmul.f32 %v393, %v330
  %v402 = vmul.f32 %v394, %v330
  %p403 = scmp.lt.f32.partialorder %s15, 0.0
  %s404 = scalar_select %p403, 1, 0
  %v405 = vstv %s404
  %vm406 = vcmp.eq.s32.totalorder %v405, 1
  %v407 = vsel %vm406, %v395, %v339
  %v408 = vsel %vm406, %v396, %v340
  %v409 = vsel %vm406, %v397, %v341
  %v410 = vsel %vm406, %v398, %v342
  %v411 = vsel %vm406, %v399, %v343
  %v412 = vsel %vm406, %v400, %v344
  %v413 = vsel %vm406, %v401, %v345
  %v414 = vsel %vm406, %v402, %v346
  %s415 = scalar_select %p16, 1, 0
  %v416 = vstv %s415
  %vm417 = vcmp.eq.s32.totalorder %v416, 1
  %v418 = vsel %vm417, %v289, %v407
  %v419 = vsel %vm417, %v290, %v408
  %v420 = vsel %vm417, %v291, %v409
  %v421 = vsel %vm417, %v292, %v410
  %v422 = vsel %vm417, %v293, %v411
  %v423 = vsel %vm417, %v294, %v412
  %v424 = vsel %vm417, %v295, %v413
  %v425 = vsel %vm417, %v296, %v414
  %426 = vst [vmem:[%s3] sm:$0xff] %v418
  %427 = vst [vmem:[%s3 + $0x8] sm:$0xff] %v419
  %428 = vst [vmem:[%s3 + $0x10] sm:$0xff] %v420
  %429 = vst [vmem:[%s3 + $0x18] sm:$0xff] %v421
  %430 = vst [vmem:[%s3 + $0x20] sm:$0xff] %v422
  %431 = vst [vmem:[%s3 + $0x28] sm:$0xff] %v423
  %432 = vst [vmem:[%s3 + $0x30] sm:$0xff] %v424
  %433 = vst [vmem:[%s3 + $0x38] sm:$0xff] %v425
  // Predicated region
  $region14: #{interpolate_add_multiply.1} parent=0 // pred_check
    _
  $region15: #{interpolate_add_multiply.1} parent=0 // pred_check_branch
    %435 = sbr.rel (0) target = $region17
  $region16: #{interpolate_add_multiply.1} parent=0 // pred_region
    _
  $region17: #{interpolate_add_multiply.1} parent=0 // pred_fallthru
    _
  // Predicated region
  $region18: #{interpolate_add_multiply.1} parent=0 // pred_check
    _
  $region19: #{interpolate_add_multiply.1} parent=0 // pred_check_branch
    %437 = sbr.rel (0) target = $region21
  $region20: #{interpolate_add_multiply.1} parent=0 // pred_region
    _
  $region21: #{interpolate_add_multiply.1} parent=0 // pred_fallthru
    _

</llo_original>
